<compile_context>
chip_gen: v7x
topology: tpu7x:2x2x1
jax: 0.10.0
libtpu: 0.0.40
codegen_flags: <defaults>
</compile_context>

<pallas_src>
import functools
import math

import jax
import jax.numpy as jnp
from jax import lax
from jax.experimental import pallas as pl
from jax.experimental.pallas import tpu as pltpu


def _xlogx(v: float) -> float:
    return float(v) * math.log(v) if v > 0.0 else 0.0


def _cdiv(a: int, b: int) -> int:
    return -(-a // b)


def _label_smoothing_kernel(x_ref, tgt_ref, out_ref, acc_ref, *,
                            confidence, smooth_val, padding_idx, ent_const,
                            n_rows, blocks_per_slice):
    p = pl.program_id(0)          # parallel slice (two TensorCores on v7x)
    j = pl.program_id(1)          # row-block reduction axis (arbitrary)

    @pl.when(j == 0)
    def _init():
        acc_ref[...] = jnp.zeros_like(acc_ref)

    x = x_ref[...].astype(jnp.float32)            # (tm, V) log-probs
    tgt = tgt_ref[...]                            # (tm, 1) int32 labels
    tm, v = x.shape

    # Cross term: sum_c td[r,c] * x[r,c] for a non-pad row, without building td:
    #   weights are `confidence` at c==tgt, `smooth_val` elsewhere, 0 at c==pad.
    col = lax.broadcasted_iota(jnp.int32, (tm, v), 1)
    w = jnp.where(col == tgt, confidence, smooth_val)             # cmp + select
    cross = jnp.sum(x * w, axis=-1, keepdims=True)                # (tm, 1)
    # Padding-column correction read straight from the ref: the big (tm,V)
    # upcast chain above keeps a single consumer (no f32 temp in VMEM).
    pad_col = x_ref[:, padding_idx:padding_idx + 1].astype(jnp.float32)
    cross = cross - smooth_val * pad_col

    # Row validity: inside the real array AND not a padding-target row.
    # Edge/phantom-block garbage rows (incl. NaN/Inf) are stopped per-row here;
    # the per-row select never lets the unselected branch leak into the sum.
    row0 = (p * blocks_per_slice + j) * tm
    row = row0 + lax.broadcasted_iota(jnp.int32, (tm, 1), 0)
    valid = jnp.logical_and(row < n_rows, tgt != padding_idx)

    # Per non-pad row: KL = sum(td*log td) - sum(td*x) = ent_const - cross.
    acc_ref[...] += jnp.where(valid, ent_const - cross, 0.0)

    @pl.when(j == pl.num_programs(1) - 1)
    def _finalize():
        out_ref[...] = jnp.sum(acc_ref[...]).reshape(1, 1, 1)


def _vmem_budgets():
    """Returns (double-buffered x-tile byte budget, scoped vmem limit)."""
    vmem_cap = None
    try:
        info = pltpu.get_tpu_info()
        vmem_cap = getattr(info, "vmem_capacity_bytes", None)
    except Exception:
        vmem_cap = None
    if vmem_cap is None:
        vmem_cap = 64 * 1024 * 1024            # conservative: v7x per-TC VMEM
    if vmem_cap >= 128 * 1024 * 1024:
        # v5e / v6e: 128 MiB physical VMEM -> bigger tiles, fewer grid steps.
        return 56 * 1024 * 1024, 100 * 1024 * 1024
    # v7x (64 MiB per TensorCore) or unknown: stay conservative.
    return 24 * 1024 * 1024, 40 * 1024 * 1024


def _num_tensorcores():
    """2 on parts whose 'parallel' grid axes shard across TensorCores (v7x)."""
    try:
        kind = (jax.devices()[0].device_kind or "").lower()
    except Exception:
        kind = ""
    return 2 if "v7" in kind else 1


def label_smoothing_loss(x, target, *, size, padding_idx, smoothing, tm=None):
    """Forward pass of LabelSmoothing: KLDivLoss(reduction='sum')(x, true_dist).

    x:      [N, size] log-probabilities (f32 or bf16)
    target: [N] integer class ids
    returns scalar float32 loss
    """
    n, v = x.shape
    assert v == size
    confidence = 1.0 - smoothing
    smooth_val = smoothing / (size - 2)
    # Entropy of the smoothed distribution of a non-pad row (compile-time const).
    ent_const = _xlogx(confidence) + (size - 2) * _xlogx(smooth_val)

    itemsize = jnp.dtype(x.dtype).itemsize
    gran = 8 if itemsize >= 4 else 16          # sublane granularity (f32 / bf16)

    tgt2d = target.astype(jnp.int32).reshape(n, 1)

    # No wrapper-side pad of the big [N, V] tensor (that was a full HBM copy):
    # ragged last blocks are masked in-kernel.  Only degenerate N < gran gets a
    # tiny pad so block shapes stay tile-legal.
    n_total = n
    if n < gran:
        pad = gran - n
        x = jnp.pad(x, ((0, pad), (0, 0)))
        tgt2d = jnp.pad(tgt2d, ((0, pad), (0, 0)), constant_values=padding_idx)
        n_total = gran

    budget, vmem_limit = _vmem_budgets()
    auto_tm = tm is None
    if auto_tm:
        # Byte-based cap: each of the two pipelined x tiles <= budget/2,
        # with a generous row cap instead of the old hard 2048.
        tm = budget // max(1, 2 * v * itemsize)
        tm = min(max(tm, gran), 8192)
    tm = max(gran, (min(tm, n_total) // gran) * gran)

    num_blocks = _cdiv(n_total, tm)
    n_tc = _num_tensorcores()
    num_slices = 2 if (n_tc >= 2 and num_blocks >= 2) else 1

    # With two TensorCores, prefer an even block count so neither core gets a
    # phantom (fully masked) step.
    if auto_tm and num_slices == 2 and num_blocks > 1 and num_blocks % 2 == 1:
        k = num_blocks + 1
        tm_even = max(gran, ((_cdiv(n_total, k) + gran - 1) // gran) * gran)
        if _cdiv(n_total, tm_even) % 2 == 0:
            tm = tm_even
            num_blocks = _cdiv(n_total, tm)

    blocks_per_slice = _cdiv(num_blocks, num_slices)

    def _blk(p, j):
        # Clamp phantom trailing blocks of the last slice (their rows are
        # masked out in-kernel via the unclamped row index vs. N check).
        return jnp.minimum(p * blocks_per_slice + j, num_blocks - 1)

    kernel = functools.partial(
        _label_smoothing_kernel,
        confidence=float(confidence),
        smooth_val=float(smooth_val),
        padding_idx=int(padding_idx),
        ent_const=float(ent_const),
        n_rows=int(n),
        blocks_per_slice=int(blocks_per_slice),
    )

    partials = pl.pallas_call(
        kernel,
        out_shape=jax.ShapeDtypeStruct((num_slices, 1, 1), jnp.float32),
        grid_spec=pltpu.PrefetchScalarGridSpec(
            num_scalar_prefetch=0,
            grid=(num_slices, blocks_per_slice),
            in_specs=[
                pl.BlockSpec((tm, v), lambda p, j: (_blk(p, j), 0)),
                pl.BlockSpec((tm, 1), lambda p, j: (_blk(p, j), 0)),
            ],
            out_specs=pl.BlockSpec((1, 1, 1), lambda p, j: (p, 0, 0)),
            scratch_shapes=[pltpu.VMEM((tm, 1), jnp.float32)],
        ),
        compiler_params=pltpu.CompilerParams(
            dimension_semantics=("parallel", "arbitrary"),
            vmem_limit_bytes=vmem_limit,
        ),
    )(x, tgt2d)
    # TODO(synk): the PyTorch module also stashes `self.true_dist`; the kernel
    # never materializes it (only the forward loss is returned).
    return jnp.sum(partials)


def _reference_loss(x, target, *, size, padding_idx, smoothing):
    n, v = x.shape
    confidence = 1.0 - smoothing
    td = jnp.full((n, v), smoothing / (size - 2), dtype=jnp.float32)
    td = td.at[jnp.arange(n), target].set(confidence)
    td = td.at[:, padding_idx].set(0.0)
    td = jnp.where((target == padding_idx)[:, None], 0.0, td)
    x32 = x.astype(jnp.float32)
    return jnp.sum(jnp.where(td > 0.0, td * jnp.log(td), 0.0) - td * x32)


def _check(N, size, padding_idx, smoothing, seed, tm=None):
    key = jax.random.PRNGKey(seed)
    k1, k2 = jax.random.split(key)
    logits = jax.random.normal(k1, (N, size), dtype=jnp.float32)
    x = jax.nn.log_softmax(logits, axis=-1)
    target = jax.random.randint(k2, (N,), 0, size, dtype=jnp.int32)
    # force a couple of padding targets to exercise the row-masking path
    target = target.at[3].set(padding_idx).at[N - 2].set(padding_idx)

    loss = label_smoothing_loss(
        x, target, size=size, padding_idx=padding_idx, smoothing=smoothing, tm=tm)
    loss = jax.block_until_ready(loss)
    ref = _reference_loss(
        x, target, size=size, padding_idx=padding_idx, smoothing=smoothing)
    assert jnp.allclose(loss, ref, rtol=1e-4, atol=1e-4), (N, size, tm, loss, ref)


if __name__ == "__main__":
    # Small canonical shape from the module (vocab=32 classes, 16 tokens).
    _check(N=16, size=32, padding_idx=0, smoothing=0.1, seed=0)
    # N not a multiple of tm -> exercises the unpadded ragged-edge mask path.
    _check(N=100, size=512, padding_idx=0, smoothing=0.1, seed=0)
    # Multiple row blocks (even block count).
    _check(N=200, size=512, padding_idx=0, smoothing=0.1, seed=0, tm=64)
    # Odd block count -> exercises the clamped phantom-block path (v7x 2-slice).
    _check(N=200, size=512, padding_idx=0, smoothing=0.1, seed=0, tm=48)
    print("KERNEL_OK")
</pallas_src>

<mosaic_0001>
module attributes {stable_mosaic.version = 11 : i64} {
  func.func @_label_smoothing_kernel(%arg0: i32, %arg1: i32, %arg2: memref<16x32xf32, #tpu.memory_space<vmem>>, %arg3: memref<16x1xi32, #tpu.memory_space<vmem>>, %arg4: memref<1x1x1xf32, #tpu.memory_space<vmem>>, %arg5: memref<16x1xf32, #tpu.memory_space<vmem>>) attributes {dimension_semantics = [#tpu.dimension_semantics<parallel>, #tpu.dimension_semantics<arbitrary>], iteration_bounds = array<i64: 1, 1>, scalar_prefetch = 0 : i64, scratch_operands = 1 : i64, tpu.core_type = #tpu.core_type<tc>, window_params = [{transform_indices = @transform_0, window_bounds = array<i64: 16, 32>}, {transform_indices = @transform_1, window_bounds = array<i64: 16, 1>}, {transform_indices = @transform_2, window_bounds = array<i64: 1, 1, 1>}]} {
    %c0_i32 = arith.constant 0 : i32
    %0 = arith.cmpi eq, %arg1, %c0_i32 : i32
    %1 = arith.extui %0 : i1 to i32
    %c0_i32_0 = arith.constant 0 : i32
    %2 = arith.cmpi ne, %1, %c0_i32_0 : i32
    scf.if %2 {
      %cst_19 = arith.constant 0.000000e+00 : f32
      %39 = vector.broadcast %cst_19 : f32 to vector<16x1xf32>
      %c0_20 = arith.constant 0 : index
      %c0_21 = arith.constant 0 : index
      %40 = vector.load %arg5[%c0_20, %c0_21] : memref<16x1xf32, #tpu.memory_space<vmem>>, vector<16x1xf32>
      tpu.vector_store %arg5[%c0_20, %c0_21], %39 {strides = array<i32>} : memref<16x1xf32, #tpu.memory_space<vmem>>, vector<16x1xf32>,
    } else {
    }
    %c0 = arith.constant 0 : index
    %c0_1 = arith.constant 0 : index
    %3 = vector.load %arg2[%c0, %c0_1] : memref<16x32xf32, #tpu.memory_space<vmem>>, vector<16x32xf32>
    %c0_2 = arith.constant 0 : index
    %c0_3 = arith.constant 0 : index
    %4 = vector.load %arg3[%c0_2, %c0_3] : memref<16x1xi32, #tpu.memory_space<vmem>>, vector<16x1xi32>
    %5 = tpu.iota {dimensions = array<i32: 1>} : vector<16x32xi32>
    %6 = vector.broadcast %4 : vector<16x1xi32> to vector<16x32xi32>
    %7 = arith.cmpi eq, %5, %6 : vector<16x32xi32>
    %cst = arith.constant 0.899999976 : f32
    %cst_4 = arith.constant 0.00333333341 : f32
    %8 = vector.broadcast %cst : f32 to vector<16x32xf32>
    %9 = vector.broadcast %cst_4 : f32 to vector<16x32xf32>
    %10 = arith.select %7, %8, %9 : vector<16x32xi1>, vector<16x32xf32>
    %11 = arith.mulf %3, %10 : vector<16x32xf32>
    %cst_5 = arith.constant dense<0.000000e+00> : vector<16xf32>
    %12 = vector.multi_reduction <add>, %11, %cst_5 [1] : vector<16x32xf32> to vector<16xf32>
    %13 = vector.shape_cast %12 : vector<16xf32> to vector<16x1xf32>
    %c0_6 = arith.constant 0 : index
    %c0_7 = arith.constant 0 : index
    %14 = vector.load %arg2[%c0_6, %c0_7] : memref<16x32xf32, #tpu.memory_space<vmem>>, vector<16x1xf32>
    %cst_8 = arith.constant 0.00333333341 : f32
    %15 = vector.broadcast %cst_8 : f32 to vector<16x1xf32>
    %16 = arith.mulf %15, %14 : vector<16x1xf32>
    %17 = arith.subf %13, %16 : vector<16x1xf32>
    %c1_i32 = arith.constant 1 : i32
    %18 = arith.muli %arg0, %c1_i32 : i32
    %19 = arith.addi %18, %arg1 : i32
    %c16_i32 = arith.constant 16 : i32
    %20 = arith.muli %19, %c16_i32 : i32
    %21 = tpu.iota {dimensions = array<i32: 0>} : vector<16x1xi32>
    %22 = vector.broadcast %20 : i32 to vector<16x1xi32>
    %23 = arith.addi %22, %21 : vector<16x1xi32>
    %c16_i32_9 = arith.constant 16 : i32
    %24 = vector.broadcast %c16_i32_9 : i32 to vector<16x1xi32>
    %25 = arith.cmpi slt, %23, %24 : vector<16x1xi32>
    %c0_i32_10 = arith.constant 0 : i32
    %26 = vector.broadcast %c0_i32_10 : i32 to vector<16x1xi32>
    %27 = arith.cmpi ne, %4, %26 : vector<16x1xi32>
    %28 = arith.andi %25, %27 : vector<16x1xi1>
    %c0_11 = arith.constant 0 : index
    %c0_12 = arith.constant 0 : index
    %29 = vector.load %arg5[%c0_11, %c0_12] : memref<16x1xf32, #tpu.memory_space<vmem>>, vector<16x1xf32>
    %cst_13 = arith.constant -0.665202737 : f32
    %30 = vector.broadcast %cst_13 : f32 to vector<16x1xf32>
    %31 = arith.subf %30, %17 : vector<16x1xf32>
    %cst_14 = arith.constant 0.000000e+00 : f32
    %32 = vector.broadcast %cst_14 : f32 to vector<16x1xf32>
    %33 = arith.select %28, %31, %32 : vector<16x1xi1>, vector<16x1xf32>
    %34 = arith.addf %29, %33 : vector<16x1xf32>
    %c0_15 = arith.constant 0 : index
    %c0_16 = arith.constant 0 : index
    %35 = vector.load %arg5[%c0_15, %c0_16] : memref<16x1xf32, #tpu.memory_space<vmem>>, vector<16x1xf32>
    tpu.vector_store %arg5[%c0_15, %c0_16], %34 {strides = array<i32>} : memref<16x1xf32, #tpu.memory_space<vmem>>, vector<16x1xf32>,
    %c0_i32_17 = arith.constant 0 : i32
    %36 = arith.cmpi eq, %arg1, %c0_i32_17 : i32
    %37 = arith.extui %36 : i1 to i32
    %c0_i32_18 = arith.constant 0 : i32
    %38 = arith.cmpi ne, %37, %c0_i32_18 : i32
    scf.if %38 {
      %c0_19 = arith.constant 0 : index
      %c0_20 = arith.constant 0 : index
      %39 = vector.load %arg5[%c0_19, %c0_20] : memref<16x1xf32, #tpu.memory_space<vmem>>, vector<16x1xf32>
      %40 = vector.shape_cast %39 : vector<16x1xf32> to vector<1x16x1xf32>
      %cst_21 = arith.constant dense<0.000000e+00> : vector<1xf32>
      %41 = vector.multi_reduction <add>, %40, %cst_21 [1, 2] : vector<1x16x1xf32> to vector<1xf32>
      %42 = vector.shape_cast %41 : vector<1xf32> to vector<1x1x1xf32>
      %43 = vector.extract %42[0, 0, 0] : f32 from vector<1x1x1xf32>
      %44 = vector.broadcast %43 : f32 to vector<1x1x1xf32>
      %c0_22 = arith.constant 0 : index
      %c0_23 = arith.constant 0 : index
      %c0_24 = arith.constant 0 : index
      %45 = vector.load %arg4[%c0_22, %c0_23, %c0_24] : memref<1x1x1xf32, #tpu.memory_space<vmem>>, vector<1x1x1xf32>
      tpu.vector_store %arg4[%c0_22, %c0_23, %c0_24], %44 {strides = array<i32>} : memref<1x1x1xf32, #tpu.memory_space<vmem>>, vector<1x1x1xf32>,
    } else {
    }
    return
  }
  func.func @transform_0(%arg0: i32, %arg1: i32) -> (i32, i32) {
    %c1_i32 = arith.constant 1 : i32
    %0 = arith.muli %arg0, %c1_i32 : i32
    %1 = arith.addi %0, %arg1 : i32
    %c0_i32 = arith.constant 0 : i32
    %2 = arith.minsi %1, %c0_i32 : i32
    %c0_i32_0 = arith.constant 0 : i32
    %c0_i32_1 = arith.constant 0 : i32
    return %2, %c0_i32_0 : i32, i32
  }
  func.func @transform_1(%arg0: i32, %arg1: i32) -> (i32, i32) {
    %c1_i32 = arith.constant 1 : i32
    %0 = arith.muli %arg0, %c1_i32 : i32
    %1 = arith.addi %0, %arg1 : i32
    %c0_i32 = arith.constant 0 : i32
    %2 = arith.minsi %1, %c0_i32 : i32
    %c0_i32_0 = arith.constant 0 : i32
    %c0_i32_1 = arith.constant 0 : i32
    return %2, %c0_i32_0 : i32, i32
  }
  func.func @transform_2(%arg0: i32, %arg1: i32) -> (i32, i32, i32) {
    %c0_i32 = arith.constant 0 : i32
    %c0_i32_0 = arith.constant 0 : i32
    %c0_i32_1 = arith.constant 0 : i32
    return %arg0, %c0_i32, %c0_i32_0 : i32, i32, i32
  }
}

</mosaic_0001>

<llo_original>
// kernel: tpu_custom_call.1
$region0: #{tpu_custom_call.1}
  #allocation0 [shape = 'u32[]', space=smem, size = 0x4, offset = 0x4, fixed_abs, tag = 'smem constant byte address 0x4 - core index']
  #allocation1 [shape = 'u32[144,128]{1,0:T(1,128)}', space=vmem, size = 0x12000, scoped, tag = 'internal scratch']
  #allocation2 [shape = 'f32[16,1]{1,0:T(8,128)}', space=vmem, size = 0x2000, scoped, tag = 'scratch operand']
  %s0 = inlined_call_operand.vmem [shape: f32[16,32], index: 0, kind: input, shape index: {}]
  %s1 = inlined_call_operand.vmem [shape: s32[16,1], index: 1, kind: input, shape index: {}]
  %s2 = inlined_call_operand.hbm [shape: f32[1,1,1], index: 2, kind: output, shape index: {}]
  %s3 = sld [smem:[#allocation0]]
  $region26: #{tpu_custom_call.1} parent=0
    _
  %s5 = ssub.s32 1, %s3
  %s6 = scalar_select 0, %s5, %s3
  $region1: #{tpu_custom_call.1} parent=0
    #allocation3 [shape = 'u8[512]{0}', space=vmem, size = 0x400, scoped, tag = 'output window, operand 0, single buffered']
    #allocation4 [shape = 's32[1]{0}', space=sflag, size = 0x4, scoped, tag = 'scoped memory for tpu_custom_call.1']
    %7 = vsyncpa [#allocation4], 0
    // Predicated region
    $region2: #{tpu_custom_call.1} parent=1 // pred_check
      _
    $region3: #{tpu_custom_call.1} parent=1 // pred_check_branch
      %9 = sbr.rel (0) target = $region5
    $region4: #{tpu_custom_call.1} parent=1 // pred_region
      %s10 = sadd.s32 0, 0
      %p11 = scmp.lt.s32.totalorder %s10, 0
      %s12 = scalar_select %p11, %s10, 0
      %s13 = smul.u32 2, %s12
      %p14 = scmp.lt.s32.totalorder %s13, 1
      %s15 = scalar_select %p14, %s13, 1
      %s16 = smul.addr %s15, 8
      %s17 = scalar_lea.vmem %s0, %s16
      %s18 = sadd.s32 0, 0
      %p19 = scmp.lt.s32.totalorder %s18, 0
      %s20 = scalar_select %p19, %s18, 0
      %s21 = smul.u32 2, %s20
    $region5: #{tpu_custom_call.1} parent=1 // pred_fallthru
      _
    // Predicated region
    $region6: #{tpu_custom_call.1} parent=1 // pred_check
      _
    $region7: #{tpu_custom_call.1} parent=1 // pred_check_branch
      %23 = sbr.rel (0) target = $region9
    $region8: #{tpu_custom_call.1} parent=1 // pred_region
      %s24 = sadd.s32 0, 0
      %p25 = scmp.lt.s32.totalorder %s24, 0
      %s26 = scalar_select %p25, %s24, 0
      %s27 = smul.u32 2, %s26
      %p28 = scmp.lt.s32.totalorder %s27, 1
      %s29 = scalar_select %p28, %s27, 1
      %s30 = smul.addr %s29, 8
      %s31 = scalar_lea.vmem %s1, %s30
      %s32 = sadd.s32 0, 0
      %p33 = scmp.lt.s32.totalorder %s32, 0
      %s34 = scalar_select %p33, %s32, 0
      %s35 = smul.u32 2, %s34
    $region9: #{tpu_custom_call.1} parent=1 // pred_fallthru
      _
    %s36 = sadd.s32 0, 0
    %p37 = scmp.lt.s32.totalorder %s36, 0
    %s38 = scalar_select %p37, %s36, 0
    %s39 = smul.u32 2, %s38
    %p40 = scmp.lt.s32.totalorder %s39, 1
    %s41 = scalar_select %p40, %s39, 1
    %s42 = smul.addr %s41, 8
    %s43 = scalar_lea.vmem %s0, %s42
    %s44 = sadd.s32 0, 0
    %p45 = scmp.lt.s32.totalorder %s44, 0
    %s46 = scalar_select %p45, %s44, 0
    %s47 = smul.u32 2, %s46
    %p48 = scmp.lt.s32.totalorder %s47, 1
    %s49 = scalar_select %p48, %s47, 1
    %s50 = smul.addr %s49, 8
    %s51 = scalar_lea.vmem %s1, %s50
    %s52 = sadd.s32 0, 0
    %p53 = scmp.lt.s32.totalorder %s52, 0
    %s54 = scalar_select %p53, %s52, 0
    %s55 = smul.u32 2, %s54
    %p56 = scmp.lt.s32.totalorder %s55, 1
    %s57 = scalar_select %p56, %s55, 1
    %s58 = smul.addr %s57, 8
    %s59 = scalar_lea.vmem %s0, %s58
    %s60 = sadd.s32 0, 0
    %p61 = scmp.lt.s32.totalorder %s60, 0
    %s62 = scalar_select %p61, %s60, 0
    %s63 = smul.u32 2, %s62
    %s64 = sadd.s32 0, 0
    %p65 = scmp.lt.s32.totalorder %s64, 0
    %s66 = scalar_select %p65, %s64, 0
    %s67 = smul.u32 2, %s66
    %p68 = scmp.lt.s32.totalorder %s67, 1
    %s69 = scalar_select %p68, %s67, 1
    %s70 = smul.addr %s69, 8
    %s71 = scalar_lea.vmem %s1, %s70
    %s72 = sadd.s32 0, 0
    %p73 = scmp.lt.s32.totalorder %s72, 0
    %s74 = scalar_select %p73, %s72, 0
    %s75 = smul.u32 2, %s74
    %p76 = scmp.eq.s32.totalorder 0, 0
    // Predicated region
    $region10: #{tpu_custom_call.1} parent=1 // pred_check
      %p77 = pneg %p76
    $region11: #{tpu_custom_call.1} parent=1 // pred_check_branch
      %79 = sbr.rel (%p77) target = $region13
    $region12: #{tpu_custom_call.1} parent=1 // pred_region
      %vm80 = vcmask 7168
      %81 = vst.msk [vmem:[#allocation2] sm:$0xff] %vm80, 0.0
      %82 = vst.msk [vmem:[#allocation2 + $0x8] sm:$0xff] %vm80, 0.0
    $region13: #{tpu_custom_call.1} parent=1 // pred_fallthru
      _
    %v83 = vld [vmem:[%s59] sm:$0xff]
    %v84 = vld [vmem:[%s59 + $0x8] sm:$0xff]
    %v85 = vld [vmem:[%s71] sm:$0xff]
    %v86 = vld [vmem:[%s71 + $0x8] sm:$0xff]
    %v87 = vlaneseq
    %v88 = vand.u32 %v87, 127
    %89 = vset.pattern.permute.xlu0 0
    %90 = vperm.xlu0 %89, %v85
    %v91 = vpop.permute.xlu0 %90
    %92 = vset.pattern.permute.xlu0 0
    %93 = vperm.xlu0 %92, %v86
    %v94 = vpop.permute.xlu0 %93
    %vm95 = vcmp.eq.s32.totalorder %v88, %v91
    %vm96 = vcmp.eq.s32.totalorder %v88, %v94
    %v97 = vsel %vm95, 0.9, 0.0033333334
    %v98 = vsel %vm96, 0.9, 0.0033333334
    %v99 = vmul.f32 %v83, %v97
    %v100 = vmul.f32 %v84, %v98
    %vm101 = vcmask 261120
    %v102 = vsel %vm101, %v99, 0.0
    %103 = vadd.xlane.f32.xlu0 %v102
    %v104 = vpop.xlane.xlu0 %103
    %v105 = vsel %vm101, %v100, 0.0
    %106 = vadd.xlane.f32.xlu0 %v105
    %v107 = vpop.xlane.xlu0 %106
    %v108 = vmul.f32 %v83, 0.0033333334
    %v109 = vmul.f32 %v84, 0.0033333334
    %v110 = vsub.f32 %v104, %v108
    %v111 = vsub.f32 %v107, %v109
    %s112 = sadd.s32 0, 0
    %s113 = smul.u32 %s112, 16
    %v114 = vlaneseq
    %v115 = vshrl.u32 %v114, 7
    %v116 = vadd.s32 %v115, 8
    %v117 = vstv %s113
    %v118 = vadd.s32 %v117, %v115
    %v119 = vadd.s32 %v117, %v116
    %vm120 = vcmp.lt.s32.totalorder %v118, 16
    %vm121 = vcmp.lt.s32.totalorder %v119, 16
    %vm122 = vcmp.ne.s32.totalorder %v85, 0
    %vm123 = vcmp.ne.s32.totalorder %v86, 0
    %vm124 = vmand %vm120, %vm122
    %vm125 = vmand %vm121, %vm123
    %v126 = vld [vmem:[#allocation2] sm:$0xff]
    %v127 = vld [vmem:[#allocation2 + $0x8] sm:$0xff]
    %v128 = vsub.f32 -0.66520274, %v110
    %v129 = vsub.f32 -0.66520274, %v111
    %v130 = vsel %vm124, %v128, 0.0
    %v131 = vsel %vm125, %v129, 0.0
    %v132 = vadd.f32 %v126, %v130
    %v133 = vadd.f32 %v127, %v131
    %vm134 = vcmask 7168
    %135 = vst.msk [vmem:[#allocation2] sm:$0xff] %vm134, %v132
    %136 = vst.msk [vmem:[#allocation2 + $0x8] sm:$0xff] %vm134, %v133
    // Predicated region
    $region14: #{tpu_custom_call.1} parent=1 // pred_check
      %p137 = pneg %p76
    $region15: #{tpu_custom_call.1} parent=1 // pred_check_branch
      %139 = sbr.rel (%p137) target = $region17
    $region16: #{tpu_custom_call.1} parent=1 // pred_region
      %v140 = vld [vmem:[#allocation2] sm:$0xff]
      %v141 = vld [vmem:[#allocation2 + $0x8] sm:$0xff]
      %v142 = vsel %vm134, %v140, 0.0
      %v143 = vsel %vm134, %v141, 0.0
      %v144 = vadd.f32 %v142, %v143
      %145 = vadd.xlane.f32.xlu0 %v144
      %v146 = vpop.xlane.xlu0 %145
      %v147 = vrot.slane %v146, 4
      %v148 = vadd.f32 %v146, %v147
      %v149 = vrot.slane %v148, 2
      %v150 = vadd.f32 %v148, %v149
      %v151 = vrot.slane %v150, 1
      %v152 = vadd.f32 %v150, %v151
      %s153 = vtos %v152
      %v154 = vstv %s153
      %vm155 = vcmask 0
      %156 = vst.msk [vmem:[#allocation3] sm:$0x1] %vm155, %v154
    $region17: #{tpu_custom_call.1} parent=1 // pred_fallthru
      _
    // Predicated region
    $region18: #{tpu_custom_call.1} parent=1 // pred_check
      _
    $region19: #{tpu_custom_call.1} parent=1 // pred_check_branch
      %158 = sbr.rel (0) target = $region21
    $region20: #{tpu_custom_call.1} parent=1 // pred_region
      %s160 = ssub.s32 16, 16
      %161 = vsyncadd [#allocation4], %s160
      %s163 = sshll.u32 [#allocation3], 4
      %s164 = int_to_ptr.vmem [resolvable:$true] %s163
      %166 = dma.vmem_to_hbm [thread:$0]  %s164, 16, %s2, [#allocation4]
    $region21: #{tpu_custom_call.1} parent=1 // pred_fallthru
      _
    // Predicated region
    $region22: #{tpu_custom_call.1} parent=1 // pred_check
      _
    $region23: #{tpu_custom_call.1} parent=1 // pred_check_branch
      %168 = sbr.rel (0) target = $region25
    $region24: #{tpu_custom_call.1} parent=1 // pred_region
      %169 = dma.done [#allocation4], 16
    $region25: #{tpu_custom_call.1} parent=1 // pred_fallthru
      _
    %170 = vsyncpa [#allocation4], 1

</llo_original>
